<compile_context>
chip_gen: v7x
topology: tpu7x:2x2x1
jax: 0.10.0
libtpu: 0.0.40
codegen_flags: <defaults>
</compile_context>

<pallas_src>
import functools
from typing import NamedTuple

import jax
import jax.numpy as jnp
from jax.experimental import pallas as pl
from jax.experimental.pallas import tpu as pltpu


def _round_up(x, m):
    return ((x + m - 1) // m) * m


# ---------------------------------------------------------------------------
# Hardware detection / generation-aware tile defaults
# ---------------------------------------------------------------------------

def _tpu_hw():
    """Best-effort (generation, vmem_capacity_bytes); degrades gracefully."""
    vmem_cap = 128 << 20
    try:
        info = pltpu.get_tpu_info()
        vmem_cap = int(getattr(info, "vmem_capacity_bytes", vmem_cap))
    except Exception:
        pass
    kind = ""
    try:
        kind = jax.devices()[0].device_kind.lower()
    except Exception:
        pass
    if "v5" in kind:
        gen = 5
    elif "v6" in kind:
        gen = 6
    elif "7" in kind:
        gen = 7
    else:
        gen = 6
    if gen == 7:
        vmem_cap = min(vmem_cap, 64 << 20)  # 64 MiB per TensorCore on v7x
    return gen, vmem_cap


def _default_tiles(gen):
    # Per grid step the arithmetic intensity is ~block_b FLOP per weight byte
    # streamed, so block_b targets each generation's HBM roofline:
    #   v5e ~240 FLOP/B -> 256 is already compute-bound
    #   v6e ~650 FLOP/B -> 768
    #   v7x ~310 FLOP/B -> 512, with smaller block_h to fit 64 MiB VMEM
    if gen == 5:
        return 256, 256
    if gen == 7:
        return 512, 256
    return 768, 512


def _vmem_footprint(tb, th, din_p, dout_p, x_bytes, w_bytes, out_bytes, use_acc):
    f = 2 * tb * din_p * x_bytes        # x tile, double-buffered
    f += 2 * th * din_p * w_bytes       # W1 chunk, double-buffered
    f += 2 * th * dout_p * w_bytes      # W2 chunk, double-buffered
    f += 2 * tb * dout_p * out_bytes    # output tile, double-buffered
    if use_acc:
        f += tb * dout_p * 4            # f32 accumulator scratch
    return f


# ---------------------------------------------------------------------------
# Activation
# ---------------------------------------------------------------------------

def _gelu_tanh(x):
    # tanh-approximate GELU; tanh goes to the EUP (separate slot).
    c = jnp.asarray(0.7978845608028654, x.dtype)  # sqrt(2/pi)
    a = jnp.asarray(0.044715, x.dtype)
    return x * (0.5 + 0.5 * jnp.tanh(c * x * (1.0 + a * x * x)))


def _apply_activation(h, activation):
    if activation == "relu":
        return jnp.maximum(h, 0.0)
    if activation == "gelu":
        return _gelu_tanh(h)
    if activation == "swish":
        return h * jax.nn.sigmoid(h)
    # TODO(synk): GEGLU (torch.nn.functional.glu) not implemented.
    raise ValueError(f"unsupported activation: {activation}")


# ---------------------------------------------------------------------------
# Kernels
# ---------------------------------------------------------------------------

def _kernel_direct(x_ref, w1_ref, w2_ref, o_ref, *, activation):
    """f32 output: accumulate straight into the VMEM-resident output tile."""
    j = pl.program_id(1)  # hidden-dim (reduction) axis

    # In-kernel bf16 cast of the resident x tile (cheap VPU op per step).
    xb = x_ref[...].astype(w1_ref.dtype)
    h = jnp.dot(xb, w1_ref[...], preferred_element_type=jnp.float32)
    h = _apply_activation(h, activation)
    # Dropout: identity in inference mode (see TODO at top of file).
    part = jnp.dot(h.astype(w2_ref.dtype), w2_ref[...],
                   preferred_element_type=jnp.float32)

    @pl.when(j == 0)
    def _():
        o_ref[...] = part            # write directly; no zero-init pass

    @pl.when(j > 0)
    def _():
        o_ref[...] += part


def _kernel_acc(x_ref, w1_ref, w2_ref, o_ref, acc_ref, *, activation):
    """Non-f32 output: accumulate in a f32 scratch, cast on the last H chunk."""
    j = pl.program_id(1)

    xb = x_ref[...].astype(w1_ref.dtype)
    h = jnp.dot(xb, w1_ref[...], preferred_element_type=jnp.float32)
    h = _apply_activation(h, activation)
    part = jnp.dot(h.astype(w2_ref.dtype), w2_ref[...],
                   preferred_element_type=jnp.float32)

    @pl.when(j == 0)
    def _():
        acc_ref[...] = part

    @pl.when(j > 0)
    def _():
        acc_ref[...] += part

    @pl.when(j == pl.num_programs(1) - 1)
    def _():
        o_ref[...] = acc_ref[...].astype(o_ref.dtype)


# ---------------------------------------------------------------------------
# Weight packing (done once at parameter-load time)
# ---------------------------------------------------------------------------

class PackedWeights(NamedTuple):
    w1: jax.Array        # [Din_p, H_p]  transposed, cast, zero-padded
    w2: jax.Array        # [H_p, Dout_p]
    input_size: int
    internal_size: int
    output_size: int
    block_h: int


def pack_double_linear_weights(w1, w2, *, block_h=None,
                               compute_dtype=jnp.bfloat16):
    """Pre-pack (transpose + cast + pad) the Linear weights once.

    w1: [H, Din]   torch nn.Linear layout (out_features, in_features)
    w2: [Dout, H]
    """
    H, Din = w1.shape
    Dout, H_w = w2.shape
    assert H == H_w, "weight shapes inconsistent"

    if block_h is None:
        block_h = _default_tiles(_tpu_hw()[0])[1]
    block_h = max(128, min(_round_up(block_h, 128), _round_up(H, 128)))

    din_p = _round_up(Din, 128)
    h_p = _round_up(H, block_h)
    dout_p = _round_up(Dout, 128)  # lane-dense output -> unmasked stores

    w1p = jnp.pad(w1.T.astype(compute_dtype),
                  ((0, din_p - Din), (0, h_p - H)))
    w2p = jnp.pad(w2.T.astype(compute_dtype),
                  ((0, h_p - H), (0, dout_p - Dout)))
    return PackedWeights(w1p, w2p, Din, H, Dout, block_h)


# ---------------------------------------------------------------------------
# Forward
# ---------------------------------------------------------------------------

def double_linear(x, weights: PackedWeights, *, activation="gelu", block_b=None):
    """DoubleLinear forward.  x: [B, Din]; weights: PackedWeights."""
    B, Din = x.shape
    assert Din == weights.input_size, "input size mismatch"
    din_p, h_p = weights.w1.shape
    h_p2, dout_p = weights.w2.shape
    assert h_p == h_p2
    Dout = weights.output_size
    block_h = weights.block_h
    out_dtype = x.dtype

    gen, vmem_cap = _tpu_hw()
    if block_b is None:
        block_b = _default_tiles(gen)[0]
    # Clamp to the (padded) batch; 16-row granularity covers f32/bf16 sublanes.
    block_b = max(16, min(_round_up(block_b, 16), _round_up(B, 16)))

    x_bytes = jnp.dtype(x.dtype).itemsize
    w_bytes = jnp.dtype(weights.w1.dtype).itemsize
    out_bytes = jnp.dtype(out_dtype).itemsize
    use_acc = jnp.dtype(out_dtype) != jnp.dtype(jnp.float32)

    # Shrink tiles until the double-buffered working set fits the VMEM budget.
    budget = int(vmem_cap * 0.8)
    while True:
        fp = _vmem_footprint(block_b, block_h, din_p, dout_p,
                             x_bytes, w_bytes, out_bytes, use_acc)
        if fp <= budget:
            break
        if block_h > 128:
            block_h //= 2            # halving keeps H_p % block_h == 0
        elif block_b > 64:
            block_b = max(64, _round_up(block_b // 2, 16))
        else:
            break

    b_p = _round_up(B, block_b)
    if b_p == B and din_p == Din:
        xp = x
    else:
        xp = jnp.pad(x, ((0, b_p - B), (0, din_p - Din)))

    grid = (b_p // block_b, h_p // block_h)
    n_b_tiles = grid[0]

    H = weights.internal_size
    cost = pl.CostEstimate(
        flops=2 * B * Din * H + 2 * B * H * Dout,
        transcendentals=B * H if activation in ("gelu", "swish") else 0,
        # Weights are re-streamed once per batch tile.
        bytes_accessed=(b_p * din_p * x_bytes
                        + n_b_tiles * (weights.w1.size + weights.w2.size) * w_bytes
                        + b_p * dout_p * out_bytes),
    )

    # Explicit scoped-VMEM limit sized from the real footprint (+ headroom).
    vmem_limit = int(min(max(int(fp * 1.25) + (2 << 20), 32 << 20),
                         int(vmem_cap * 0.95)))

    scratch = [] if not use_acc else [pltpu.VMEM((block_b, dout_p), jnp.float32)]
    kernel = functools.partial(_kernel_acc if use_acc else _kernel_direct,
                               activation=activation)

    out_p = pl.pallas_call(
        kernel,
        out_shape=jax.ShapeDtypeStruct((b_p, dout_p), out_dtype),
        grid_spec=pltpu.PrefetchScalarGridSpec(
            num_scalar_prefetch=0,
            grid=grid,
            in_specs=[
                # x tile: constant across the H axis -> resident per i.
                pl.BlockSpec((block_b, din_p), lambda i, j: (i, 0)),
                # W1 chunk of columns (H axis sliced).
                pl.BlockSpec((din_p, block_h), lambda i, j: (0, j)),
                # W2 chunk of rows (H axis sliced).
                pl.BlockSpec((block_h, dout_p), lambda i, j: (j, 0)),
            ],
            out_specs=pl.BlockSpec((block_b, dout_p), lambda i, j: (i, 0)),
            scratch_shapes=scratch,
        ),
        compiler_params=pltpu.CompilerParams(
            # NOTE(v7x): "parallel" shards batch tiles across the 2 TCs, so each
            # core re-streams W1/W2; large block_b keeps that under the HBM
            # roofline.  For tiny-B inference, splitting the H axis across cores
            # with a shared combine would be preferable.
            dimension_semantics=("parallel", "arbitrary"),
            vmem_limit_bytes=vmem_limit,
        ),
        cost_estimate=cost,
    )(xp, weights.w1, weights.w2)

    return out_p[:B, :Dout]


def double_linear_ref(x, w1, w2, *, activation="gelu",
                      compute_dtype=jnp.bfloat16):
    """Pure-JAX reference mirroring the kernel's dtype policy."""
    xc = x.astype(compute_dtype)
    w1_t = w1.T.astype(compute_dtype)
    w2_t = w2.T.astype(compute_dtype)
    h = jnp.dot(xc, w1_t, preferred_element_type=jnp.float32)
    h = _apply_activation(h, activation)
    return jnp.dot(h.astype(compute_dtype), w2_t,
                   preferred_element_type=jnp.float32).astype(x.dtype)


if __name__ == "__main__":
    # Small shapes consistent with the module's forward: [batch, input_size].
    # Chosen so B, Din, H, Dout all need padding/tiling and both grid axes have
    # >1 step (2 batch tiles x 3 H-reduction chunks) to exercise the pipeline
    # and the accumulator init/finalize paths.
    batch, input_size, internal_size, output_size = 32, 96, 320, 48

    key = jax.random.PRNGKey(0)
    kx, k1, k2 = jax.random.split(key, 3)

    x = jax.random.normal(kx, (batch, input_size), dtype=jnp.float32)
    # torch.nn.Linear stores weight as [out_features, in_features].
    w1 = jax.random.normal(k1, (internal_size, input_size), dtype=jnp.float32) * (
        1.0 / jnp.sqrt(input_size))
    w2 = jax.random.normal(k2, (output_size, internal_size), dtype=jnp.float32) * (
        1.0 / jnp.sqrt(internal_size))

    # Pack weights ONCE (hoisted out of the per-forward path).  Small test-time
    # tiles; production defaults come from _default_tiles().
    packed = pack_double_linear_weights(w1, w2, block_h=128)

    # f32 output -> direct accumulation into the resident output tile.
    out = double_linear(x, packed, activation="gelu", block_b=16)
    out = jax.block_until_ready(out)
    ref = double_linear_ref(x, w1, w2, activation="gelu")
    assert out.shape == (batch, output_size)
    err = jnp.max(jnp.abs(out - ref))
    assert jnp.allclose(out, ref, atol=2e-3, rtol=2e-3), (
        f"gelu mismatch vs JAX reference: max abs err {err:.3e}")

    out_r = double_linear(x, packed, activation="relu", block_b=16)
    out_r = jax.block_until_ready(out_r)
    ref_r = double_linear_ref(x, w1, w2, activation="relu")
    err_r = jnp.max(jnp.abs(out_r - ref_r))
    assert jnp.allclose(out_r, ref_r, atol=2e-3, rtol=2e-3), (
        f"relu mismatch vs JAX reference: max abs err {err_r:.3e}")

    # bf16 input/output -> f32 accumulator-scratch path.
    xb = x.astype(jnp.bfloat16)
    out_b = double_linear(xb, packed, activation="swish", block_b=16)
    out_b = jax.block_until_ready(out_b)
    ref_b = double_linear_ref(xb, w1, w2, activation="swish")
    err_b = jnp.max(jnp.abs(out_b.astype(jnp.float32) - ref_b.astype(jnp.float32)))
    assert jnp.allclose(out_b.astype(jnp.float32), ref_b.astype(jnp.float32),
                        atol=3e-2, rtol=3e-2), (
        f"swish/bf16 mismatch vs JAX reference: max abs err {err_b:.3e}")

    print("KERNEL_OK")
</pallas_src>

<mosaic_0001>
module attributes {stable_mosaic.version = 11 : i64} {
  func.func @_kernel_direct(%arg0: i32, %arg1: i32, %arg2: memref<16x128xf32, #tpu.memory_space<vmem>>, %arg3: memref<128x128xbf16, #tpu.memory_space<vmem>>, %arg4: memref<128x128xbf16, #tpu.memory_space<vmem>>, %arg5: memref<16x128xf32, #tpu.memory_space<vmem>>) attributes {dimension_semantics = [#tpu.dimension_semantics<parallel>, #tpu.dimension_semantics<arbitrary>], iteration_bounds = array<i64: 2, 3>, scalar_prefetch = 0 : i64, scratch_operands = 0 : i64, tpu.core_type = #tpu.core_type<tc>, window_params = [{transform_indices = @transform_0, window_bounds = array<i64: 16, 128>}, {transform_indices = @transform_1, window_bounds = array<i64: 128, 128>}, {transform_indices = @transform_2, window_bounds = array<i64: 128, 128>}, {transform_indices = @transform_3, window_bounds = array<i64: 16, 128>}]} {
    %c0 = arith.constant 0 : index
    %c0_0 = arith.constant 0 : index
    %0 = vector.load %arg2[%c0, %c0_0] : memref<16x128xf32, #tpu.memory_space<vmem>>, vector<16x128xf32>
    %1 = arith.truncf %0 : vector<16x128xf32> to vector<16x128xbf16>
    %c0_1 = arith.constant 0 : index
    %c0_2 = arith.constant 0 : index
    %2 = vector.load %arg3[%c0_1, %c0_2] : memref<128x128xbf16, #tpu.memory_space<vmem>>, vector<128x128xbf16>
    %cst = arith.constant dense<0.000000e+00> : vector<16x128xf32>
    %3 = tpu.matmul %1, %2, %cst {dimension_numbers = #tpu.dot_dimension_numbers<[1], [0], [0], [1], [0, 0, 1, 1], [], []>} : vector<16x128xbf16>, vector<128x128xbf16>, vector<16x128xf32> -> vector<16x128xf32>
    %cst_3 = arith.constant 0.797884583 : f32
    %4 = vector.broadcast %cst_3 : f32 to vector<16x128xf32>
    %5 = arith.mulf %4, %3 : vector<16x128xf32>
    %cst_4 = arith.constant 4.471500e-02 : f32
    %6 = vector.broadcast %cst_4 : f32 to vector<16x128xf32>
    %7 = arith.mulf %6, %3 : vector<16x128xf32>
    %8 = arith.mulf %7, %3 : vector<16x128xf32>
    %cst_5 = arith.constant 1.000000e+00 : f32
    %9 = vector.broadcast %cst_5 : f32 to vector<16x128xf32>
    %10 = arith.addf %9, %8 : vector<16x128xf32>
    %11 = arith.mulf %5, %10 : vector<16x128xf32>
    %12 = math.tanh %11 : vector<16x128xf32>
    %cst_6 = arith.constant 5.000000e-01 : f32
    %13 = vector.broadcast %cst_6 : f32 to vector<16x128xf32>
    %14 = arith.mulf %13, %12 : vector<16x128xf32>
    %cst_7 = arith.constant 5.000000e-01 : f32
    %15 = vector.broadcast %cst_7 : f32 to vector<16x128xf32>
    %16 = arith.addf %15, %14 : vector<16x128xf32>
    %17 = arith.mulf %3, %16 : vector<16x128xf32>
    %18 = arith.truncf %17 : vector<16x128xf32> to vector<16x128xbf16>
    %c0_8 = arith.constant 0 : index
    %c0_9 = arith.constant 0 : index
    %19 = vector.load %arg4[%c0_8, %c0_9] : memref<128x128xbf16, #tpu.memory_space<vmem>>, vector<128x128xbf16>
    %cst_10 = arith.constant dense<0.000000e+00> : vector<16x128xf32>
    %20 = tpu.matmul %18, %19, %cst_10 {dimension_numbers = #tpu.dot_dimension_numbers<[1], [0], [0], [1], [0, 0, 1, 1], [], []>} : vector<16x128xbf16>, vector<128x128xbf16>, vector<16x128xf32> -> vector<16x128xf32>
    %c0_i32 = arith.constant 0 : i32
    %21 = arith.cmpi eq, %arg1, %c0_i32 : i32
    %22 = arith.extui %21 : i1 to i32
    %c0_i32_11 = arith.constant 0 : i32
    %23 = arith.cmpi ne, %22, %c0_i32_11 : i32
    scf.if %23 {
      %c0_14 = arith.constant 0 : index
      %c0_15 = arith.constant 0 : index
      %27 = vector.load %arg5[%c0_14, %c0_15] : memref<16x128xf32, #tpu.memory_space<vmem>>, vector<16x128xf32>
      tpu.vector_store %arg5[%c0_14, %c0_15], %20 {strides = array<i32>} : memref<16x128xf32, #tpu.memory_space<vmem>>, vector<16x128xf32>,
    } else {
    }
    %c0_i32_12 = arith.constant 0 : i32
    %24 = arith.cmpi sgt, %arg1, %c0_i32_12 : i32
    %25 = arith.extui %24 : i1 to i32
    %c0_i32_13 = arith.constant 0 : i32
    %26 = arith.cmpi ne, %25, %c0_i32_13 : i32
    scf.if %26 {
      %c0_14 = arith.constant 0 : index
      %c0_15 = arith.constant 0 : index
      %27 = vector.load %arg5[%c0_14, %c0_15] : memref<16x128xf32, #tpu.memory_space<vmem>>, vector<16x128xf32>
      %28 = arith.addf %27, %20 : vector<16x128xf32>
      %c0_16 = arith.constant 0 : index
      %c0_17 = arith.constant 0 : index
      %29 = vector.load %arg5[%c0_16, %c0_17] : memref<16x128xf32, #tpu.memory_space<vmem>>, vector<16x128xf32>
      tpu.vector_store %arg5[%c0_16, %c0_17], %28 {strides = array<i32>} : memref<16x128xf32, #tpu.memory_space<vmem>>, vector<16x128xf32>,
    } else {
    }
    return
  }
  func.func @transform_0(%arg0: i32, %arg1: i32) -> (i32, i32) {
    %c0_i32 = arith.constant 0 : i32
    %c0_i32_0 = arith.constant 0 : i32
    return %arg0, %c0_i32 : i32, i32
  }
  func.func @transform_1(%arg0: i32, %arg1: i32) -> (i32, i32) {
    %c0_i32 = arith.constant 0 : i32
    %c0_i32_0 = arith.constant 0 : i32
    return %c0_i32, %arg1 : i32, i32
  }
  func.func @transform_2(%arg0: i32, %arg1: i32) -> (i32, i32) {
    %c0_i32 = arith.constant 0 : i32
    %c0_i32_0 = arith.constant 0 : i32
    return %arg1, %c0_i32 : i32, i32
  }
  func.func @transform_3(%arg0: i32, %arg1: i32) -> (i32, i32) {
    %c0_i32 = arith.constant 0 : i32
    %c0_i32_0 = arith.constant 0 : i32
    return %arg0, %c0_i32 : i32, i32
  }
}

</mosaic_0001>

<llo_original>
// kernel: tpu_custom_call.1
$region0: #{tpu_custom_call.1}
  #allocation0 [shape = 'u32[]', space=smem, size = 0x4, offset = 0x4, fixed_abs, tag = 'smem constant byte address 0x4 - core index']
  #allocation1 [shape = 'u32[144,128]{1,0:T(1,128)}', space=vmem, size = 0x12000, scoped, tag = 'internal scratch']
  %s0 = inlined_call_operand.hbm [shape: f32[32,128], index: 0, kind: input, shape index: {}]
  %s1 = inlined_call_operand.hbm [shape: bf16[128,384], index: 1, kind: input, shape index: {}]
  %s2 = inlined_call_operand.hbm [shape: bf16[384,128], index: 2, kind: input, shape index: {}]
  %s3 = inlined_call_operand.hbm [shape: f32[32,128], index: 3, kind: output, shape index: {}]
  %s4 = sld [smem:[#allocation0]]
  $region65: #{tpu_custom_call.1} parent=0
    _
  %s6 = ssub.s32 1, %s4
  %s7 = scalar_select 0, %s6, %s4
  $region1: #{tpu_custom_call.1} parent=0
    #allocation2 [shape = 'u8[16384]{0}', space=vmem, size = 0x4000, scoped, tag = 'input window, operand 0']
    #allocation3 [shape = 's32[2]{0}', space=sflag, size = 0x8, scoped, tag = 'scoped memory for tpu_custom_call.1']
    #allocation4 [shape = 's32[2]{0}', space=sflag, size = 0x8, scoped, tag = 'scoped memory for tpu_custom_call.1']
    #allocation5 [shape = 'u8[65536]{0}', space=vmem, size = 0x10000, scoped, tag = 'input window, operand 1']
    #allocation6 [shape = 's32[2]{0}', space=sflag, size = 0x8, scoped, tag = 'scoped memory for tpu_custom_call.1']
    #allocation7 [shape = 'u8[65536]{0}', space=vmem, size = 0x10000, scoped, tag = 'input window, operand 2']
    #allocation8 [shape = 'u8[16384]{0}', space=vmem, size = 0x4000, scoped, tag = 'output window, operand 0']
    %8 = vsyncpa [#allocation3], 0
    %s9 = scalar_lea.sflag [#allocation3], 1
    %10 = vsyncpa %s9, 0
    %11 = vsyncpa [#allocation6], 0
    %s12 = scalar_lea.sflag [#allocation6], 1
    %13 = vsyncpa %s12, 0
    %14 = vsyncpa [#allocation4], 0
    %s15 = scalar_lea.sflag [#allocation4], 1
    %16 = vsyncpa %s15, 0
    loop: start=0, step=1, limit=8
    $region2: #{tpu_custom_call.1} parent=1 // loop_pre_header
      _
    $region3: #{tpu_custom_call.1} parent=1 // loop_header
      %s18 = sphi 0, %s22
      %p19 = scmp.ge.s32.totalorder %s18, 8
      %s25 = sphi 0, %s37
      %s26 = sphi 0, %s33
      %s27 = sphi 0, %s25
      %s28 = sphi 0, %s26
      %s29 = sphi 0, %s27
      %s30 = sphi 0, %s28
      %s40 = sphi 0, %s42
      %s43 = sphi 0, %s40
      %s44 = sphi 0, %s43
      %s60 = sphi 0, %s44
      %s66 = sphi 0, %s68
      %s69 = sphi 0, %s66
      %s70 = sphi 0, %s69
      %s86 = sphi 0, %s70
      %s92 = sphi 0, %s94
      %s95 = sphi 0, %s92
      %s96 = sphi 0, %s95
      %s112 = sphi 0, %s96
      %s118 = sphi 0, %s120
      %s121 = sphi 0, %s118
      %s122 = sphi 0, %s121
      %s138 = sphi 0, %s122
    $region4: #{tpu_custom_call.1} parent=1 // loop_header_branch
      %21 = sbr.rel (%p19) target = $region8
    $region5: #{tpu_custom_call.1} parent=1 // loop_body
      %s23 = ssub.s32 %s18, 1
      %s24 = ssub.s32 %s18, 2
      %s31 = sadd.s32 1, %s26
      %p32 = scmp.ge.s32.totalorder %s31, 3
      %s33 = scalar_select %p32, 0, %s31
      %s34 = sadd.s32 1, %s25
      %s35 = scalar_select %p32, %s34, %s25
      %p36 = scmp.ge.s32.totalorder %s35, 2
      %s37 = scalar_select %p36, 0, %s35
      %s38 = ssub.s32 %s25, %s37
      %p39 = scmp.eq.s32.totalorder %s38, 0
      %s41 = sadd.s32 %s40, 1
      %s42 = scalar_select %p39, %s40, %s41
      %p45 = pneg %p39
      %p46 = scmp.eq.s32.totalorder %s18, 5
      %p47 = por %p45, %p46
      %p48 = scmp.ne.s32.totalorder %s40, %s43
      %p49 = scmp.eq.s32.totalorder %s18, 0
      %p50 = por %p48, %p49
      %p51 = scmp.ne.s32.totalorder %s40, %s43
      %p52 = scmp.eq.s32.totalorder %s23, 5
      %p53 = por %p51, %p52
      %p54 = scmp.ne.s32.totalorder %s43, %s44
      %p55 = scmp.eq.s32.totalorder %s23, 0
      %p56 = por %p54, %p55
      %p57 = scmp.ne.s32.totalorder %s43, %s44
      %p58 = scmp.eq.s32.totalorder %s24, 5
      %p59 = por %p57, %p58
      %p61 = scmp.ne.s32.totalorder %s44, %s60
      %p62 = scmp.eq.s32.totalorder %s24, 0
      %p63 = por %p61, %p62
      %s64 = ssub.s32 %s26, %s33
      %p65 = scmp.eq.s32.totalorder %s64, 0
      %s67 = sadd.s32 %s66, 1
      %s68 = scalar_select %p65, %s66, %s67
      %p71 = pneg %p65
      %p72 = scmp.eq.s32.totalorder %s18, 5
      %p73 = por %p71, %p72
      %p74 = scmp.ne.s32.totalorder %s66, %s69
      %p75 = scmp.eq.s32.totalorder %s18, 0
      %p76 = por %p74, %p75
      %p77 = scmp.ne.s32.totalorder %s66, %s69
      %p78 = scmp.eq.s32.totalorder %s23, 5
      %p79 = por %p77, %p78
      %p80 = scmp.ne.s32.totalorder %s69, %s70
      %p81 = scmp.eq.s32.totalorder %s23, 0
      %p82 = por %p80, %p81
      %p83 = scmp.ne.s32.totalorder %s69, %s70
      %p84 = scmp.eq.s32.totalorder %s24, 5
      %p85 = por %p83, %p84
      %p87 = scmp.ne.s32.totalorder %s70, %s86
      %p88 = scmp.eq.s32.totalorder %s24, 0
      %p89 = por %p87, %p88
      %s90 = ssub.s32 %s26, %s33
      %p91 = scmp.eq.s32.totalorder %s90, 0
      %s93 = sadd.s32 %s92, 1
      %s94 = scalar_select %p91, %s92, %s93
      %p97 = pneg %p91
      %p98 = scmp.eq.s32.totalorder %s18, 5
      %p99 = por %p97, %p98
      %p100 = scmp.ne.s32.totalorder %s92, %s95
      %p101 = scmp.eq.s32.totalorder %s18, 0
      %p102 = por %p100, %p101
      %p103 = scmp.ne.s32.totalorder %s92, %s95
      %p104 = scmp.eq.s32.totalorder %s23, 5
      %p105 = por %p103, %p104
      %p106 = scmp.ne.s32.totalorder %s95, %s96
      %p107 = scmp.eq.s32.totalorder %s23, 0
      %p108 = por %p106, %p107
      %p109 = scmp.ne.s32.totalorder %s95, %s96
      %p110 = scmp.eq.s32.totalorder %s24, 5
      %p111 = por %p109, %p110
      %p113 = scmp.ne.s32.totalorder %s96, %s112
      %p114 = scmp.eq.s32.totalorder %s24, 0
      %p115 = por %p113, %p114
      %s116 = ssub.s32 %s25, %s37
      %p117 = scmp.eq.s32.totalorder %s116, 0
      %s119 = sadd.s32 %s118, 1
      %s120 = scalar_select %p117, %s118, %s119
      %p123 = pneg %p117
      %p124 = scmp.eq.s32.totalorder %s18, 5
      %p125 = por %p123, %p124
      %p126 = scmp.ne.s32.totalorder %s118, %s121
      %p127 = scmp.eq.s32.totalorder %s18, 0
      %p128 = por %p126, %p127
      %p129 = scmp.ne.s32.totalorder %s118, %s121
      %p130 = scmp.eq.s32.totalorder %s23, 5
      %p131 = por %p129, %p130
      %p132 = scmp.ne.s32.totalorder %s121, %s122
      %p133 = scmp.eq.s32.totalorder %s23, 0
      %p134 = por %p132, %p133
      %p135 = scmp.ne.s32.totalorder %s121, %s122
      %p136 = scmp.eq.s32.totalorder %s24, 5
      %p137 = por %p135, %p136
      %p139 = scmp.ne.s32.totalorder %s122, %s138
      %p140 = scmp.eq.s32.totalorder %s24, 0
      %p141 = por %p139, %p140
      %p142 = scmp.le.s32.totalorder 1, %s18
      %p143 = scmp.lt.s32.totalorder %s18, 7
      %p144 = pnand %p142, %p143
      %p145 = pneg %p144
      // Predicated region
      $region9: #{tpu_custom_call.1} parent=5 // pred_check
        _
      $region10: #{tpu_custom_call.1} parent=5 // pred_check_branch
        %147 = sbr.rel (%p144) target = $region12
      $region11: #{tpu_custom_call.1} parent=5 // pred_region
        %s148 = ssub.s32 %s18, 1
      $region12: #{tpu_custom_call.1} parent=5 // pred_fallthru
        _
      %p149 = scmp.lt.s32.totalorder %s18, 6
      // Predicated region
      $region13: #{tpu_custom_call.1} parent=5 // pred_check
        %p150 = pneg %p149
      $region14: #{tpu_custom_call.1} parent=5 // pred_check_branch
        %152 = sbr.rel (%p150) target = $region16
      $region15: #{tpu_custom_call.1} parent=5 // pred_region
        // Predicated region
        $region17: #{tpu_custom_call.1} parent=15 // pred_check
          %p153 = pneg %p50
        $region18: #{tpu_custom_call.1} parent=15 // pred_check_branch
          %155 = sbr.rel (%p153) target = $region20
        $region19: #{tpu_custom_call.1} parent=15 // pred_region
          %s156 = sand.u32 %s40, 1
          %s157 = scalar_lea.sflag [#allocation3], %s156
          %s158 = sand.u32 %s40, 1
          %s159 = smul.addr %s158, 16
          %s160 = scalar_lea.vmem [#allocation2], %s159
          %s161 = smul.u32 2, %s25
          %s163 = ssub.s32 256, 256
          %164 = vsyncadd %s157, %s163
          %s165 = smul.addr %s161, 128
          %s166 = scalar_lea.hbm %s0, %s165
          %s167 = sshll.u32 %s160, 4
          %s168 = int_to_ptr.vmem [resolvable:$true] %s167
          %173 = dma.hbm_to_vmem [thread:$0]  %s166, 256, %s168, %s157, 128, 128, 8
        $region20: #{tpu_custom_call.1} parent=15 // pred_fallthru
          _
        // Predicated region
        $region21: #{tpu_custom_call.1} parent=15 // pred_check
          %p174 = pneg %p76
        $region22: #{tpu_custom_call.1} parent=15 // pred_check_branch
          %176 = sbr.rel (%p174) target = $region24
        $region23: #{tpu_custom_call.1} parent=15 // pred_region
          %s177 = sand.u32 %s18, 1
          %s178 = scalar_lea.sflag [#allocation6], %s177
          %s179 = sand.u32 %s66, 1
          %s180 = smul.addr %s179, 64
          %s181 = scalar_lea.vmem [#allocation5], %s180
          %s183 = ssub.s32 1024, 1024
          %184 = vsyncadd %s178, %s183
          %s185 = smul.addr %s26, 64
          %s186 = scalar_lea.hbm %s1, %s185
          %s187 = sshll.u32 %s181, 4
          %s188 = int_to_ptr.vmem [resolvable:$true] %s187
          %193 = dma.hbm_to_vmem [thread:$0]  %s186, 1024, %s188, %s178, 192, 64, 4
        $region24: #{tpu_custom_call.1} parent=15 // pred_fallthru
          _
        // Predicated region
        $region25: #{tpu_custom_call.1} parent=15 // pred_check
          %p194 = pneg %p102
        $region26: #{tpu_custom_call.1} parent=15 // pred_check_branch
          %196 = sbr.rel (%p194) target = $region28
        $region27: #{tpu_custom_call.1} parent=15 // pred_region
          %s197 = sand.u32 %s18, 1
          %s198 = scalar_lea.sflag [#allocation6], %s197
          %s199 = sand.u32 %s92, 1
          %s200 = smul.addr %s199, 64
          %s201 = scalar_lea.vmem [#allocation7], %s200
          %s202 = smul.u32 16, %s26
          %s204 = ssub.s32 1024, 1024
          %205 = vsyncadd %s198, %s204
          %s206 = smul.addr %s202, 64
          %s207 = scalar_lea.hbm %s2, %s206
          %s208 = sshll.u32 %s201, 4
          %s209 = int_to_ptr.vmem [resolvable:$true] %s208
          %214 = dma.hbm_to_vmem [thread:$0]  %s207, 1024, %s209, %s198, 64, 64, 4
        $region28: #{tpu_custom_call.1} parent=15 // pred_fallthru
          _
      $region16: #{tpu_custom_call.1} parent=5 // pred_fallthru
        _
      %p215 = scmp.le.s32.totalorder 1, %s18
      %p216 = scmp.lt.s32.totalorder %s18, 7
      %p217 = pnand %p215, %p216
      %p218 = pneg %p217
      // Predicated region
      $region29: #{tpu_custom_call.1} parent=5 // pred_check
        _
      $region30: #{tpu_custom_call.1} parent=5 // pred_check_branch
        %220 = sbr.rel (%p217) target = $region32
      $region31: #{tpu_custom_call.1} parent=5 // pred_region
        %s221 = ssub.s32 %s18, 1
        %s222 = sand.u32 %s43, 1
        %s223 = scalar_lea.sflag [#allocation3], %s222
        %s224 = sand.u32 %s43, 1
        %s225 = smul.addr %s224, 16
        %s226 = scalar_lea.vmem [#allocation2], %s225
        // Predicated region
        $region33: #{tpu_custom_call.1} parent=31 // pred_check
          %p227 = pneg %p56
        $region34: #{tpu_custom_call.1} parent=31 // pred_check_branch
          %229 = sbr.rel (%p227) target = $region36
        $region35: #{tpu_custom_call.1} parent=31 // pred_region
          %230 = dma.done %s223, 256
        $region36: #{tpu_custom_call.1} parent=31 // pred_fallthru
          _
        %s231 = sand.u32 %s23, 1
        %s232 = scalar_lea.sflag [#allocation6], %s231
        %s233 = sand.u32 %s69, 1
        %s234 = smul.addr %s233, 64
        %s235 = scalar_lea.vmem [#allocation5], %s234
        // Predicated region
        $region37: #{tpu_custom_call.1} parent=31 // pred_check
          %p236 = pneg %p82
        $region38: #{tpu_custom_call.1} parent=31 // pred_check_branch
          %238 = sbr.rel (%p236) target = $region40
        $region39: #{tpu_custom_call.1} parent=31 // pred_region
          %239 = dma.done %s232, 1024
        $region40: #{tpu_custom_call.1} parent=31 // pred_fallthru
          _
        %s240 = sand.u32 %s23, 1
        %s241 = scalar_lea.sflag [#allocation6], %s240
        %s242 = sand.u32 %s95, 1
        %s243 = smul.addr %s242, 64
        %s244 = scalar_lea.vmem [#allocation7], %s243
        // Predicated region
        $region41: #{tpu_custom_call.1} parent=31 // pred_check
          %p245 = pneg %p108
        $region42: #{tpu_custom_call.1} parent=31 // pred_check_branch
          %247 = sbr.rel (%p245) target = $region44
        $region43: #{tpu_custom_call.1} parent=31 // pred_region
          %248 = dma.done %s241, 1024
        $region44: #{tpu_custom_call.1} parent=31 // pred_fallthru
          _
        %s249 = sand.u32 %s43, 1
        %s250 = scalar_lea.sflag [#allocation3], %s249
        %s251 = sand.u32 %s43, 1
        %s252 = smul.addr %s251, 16
        %s253 = scalar_lea.vmem [#allocation2], %s252
        %p254 = pneg %p56
        %p255 = pneg %p53
        %s256 = sand.u32 %s23, 1
        %s257 = scalar_lea.sflag [#allocation6], %s256
        %s258 = sand.u32 %s69, 1
        %s259 = smul.addr %s258, 64
        %s260 = scalar_lea.vmem [#allocation5], %s259
        %p261 = pneg %p82
        %p262 = pneg %p79
        %s263 = sand.u32 %s23, 1
        %s264 = scalar_lea.sflag [#allocation6], %s263
        %s265 = sand.u32 %s95, 1
        %s266 = smul.addr %s265, 64
        %s267 = scalar_lea.vmem [#allocation7], %s266
        %p268 = pneg %p108
        %p269 = pneg %p105
        %p270 = pneg %p134
        %p271 = pneg %p131
        %s272 = sand.u32 %s121, 1
        %s273 = scalar_lea.sflag [#allocation4], %s272
        %s274 = sand.u32 %s121, 1
        %s275 = smul.addr %s274, 16
        %s276 = scalar_lea.vmem [#allocation8], %s275
        %s277 = smul.u32 2, %s27
        %s278 = smul.u32 16, %s28
        %s279 = smul.u32 2, %s27
        %v281 = vld [vmem:[%s226] sm:$0xff]
        %v282 = vld [vmem:[%s226 + $0x8] sm:$0xff]
        %v283 = vpack.c.bf16 %v282, %v281
        %v284 = vld [vmem:[%s235] sm:$0xf]
        %v285 = vld [vmem:[%s235 + $0x4] sm:$0xf]
        %v286 = vld [vmem:[%s235 + $0x8] sm:$0xf]
        %v287 = vld [vmem:[%s235 + $0xc] sm:$0xf]
        %v288 = vld [vmem:[%s235 + $0x10] sm:$0xf]
        %v289 = vld [vmem:[%s235 + $0x14] sm:$0xf]
        %v290 = vld [vmem:[%s235 + $0x18] sm:$0xf]
        %v291 = vld [vmem:[%s235 + $0x1c] sm:$0xf]
        %v292 = vld [vmem:[%s235 + $0x20] sm:$0xf]
        %v293 = vld [vmem:[%s235 + $0x24] sm:$0xf]
        %v294 = vld [vmem:[%s235 + $0x28] sm:$0xf]
        %v295 = vld [vmem:[%s235 + $0x2c] sm:$0xf]
        %v296 = vld [vmem:[%s235 + $0x30] sm:$0xf]
        %v297 = vld [vmem:[%s235 + $0x34] sm:$0xf]
        %v298 = vld [vmem:[%s235 + $0x38] sm:$0xf]
        %v299 = vld [vmem:[%s235 + $0x3c] sm:$0xf]
        %v316 = vunpack.c.l.b16 %v284
        %v317 = vunpack.c.l.b16 %v285
        %v318 = vunpack.c.l.b16 %v286
        %v319 = vunpack.c.l.b16 %v287
        %v320 = vunpack.c.l.b16 %v288
        %v321 = vunpack.c.l.b16 %v289
        %v322 = vunpack.c.l.b16 %v290
        %v323 = vunpack.c.l.b16 %v291
        %v324 = vunpack.c.l.b16 %v292
        %v325 = vunpack.c.l.b16 %v293
        %v326 = vunpack.c.l.b16 %v294
        %v327 = vunpack.c.l.b16 %v295
        %v328 = vunpack.c.l.b16 %v296
        %v329 = vunpack.c.l.b16 %v297
        %v330 = vunpack.c.l.b16 %v298
        %v331 = vunpack.c.l.b16 %v299
        %v332 = vpack.c.b16 %v317, %v316
        %v333 = vpack.c.b16 %v319, %v318
        %v334 = vpack.c.b16 %v321, %v320
        %v335 = vpack.c.b16 %v323, %v322
        %v336 = vpack.c.b16 %v325, %v324
        %v337 = vpack.c.b16 %v327, %v326
        %v338 = vpack.c.b16 %v329, %v328
        %v339 = vpack.c.b16 %v331, %v330
        %348 = vmatprep.subr.bf16.mxu0 0
        %349 = vmatpush1.bf16.msra.mxu0 %v332
        %350 = vmatprep.subr.bf16.mxu0 0
        %351 = vmatpush1.bf16.msra.mxu0 %v333
        %352 = vmatprep.subr.bf16.mxu0 0
        %353 = vmatpush1.bf16.msra.mxu0 %v334
        %354 = vmatprep.subr.bf16.mxu0 0
        %355 = vmatpush1.bf16.msra.mxu0 %v335
        %356 = vmatprep.subr.bf16.mxu0 0
        %357 = vmatpush1.bf16.msra.mxu0 %v336
        %358 = vmatprep.subr.bf16.mxu0 0
        %359 = vmatpush1.bf16.msra.mxu0 %v337
        %360 = vmatprep.subr.bf16.mxu0 0
        %361 = vmatpush1.bf16.msra.mxu0 %v338
        %362 = vmatprep.subr.bf16.mxu0 0
        %363 = vmatpush1.bf16.msra.mxu0 %v339
        %364 = vmatprep.subr.bf16.mxu0 0
        %365 = vmatpush1.bf16.msra.mxu0 0
        %366 = vmatprep.subr.bf16.mxu0 0
        %367 = vmatpush1.bf16.msra.mxu0 0
        %368 = vmatprep.subr.bf16.mxu0 0
        %369 = vmatpush1.bf16.msra.mxu0 0
        %370 = vmatprep.subr.bf16.mxu0 0
        %371 = vmatpush1.bf16.msra.mxu0 0
        %372 = vmatprep.subr.bf16.mxu0 0
        %373 = vmatpush1.bf16.msra.mxu0 0
        %374 = vmatprep.subr.bf16.mxu0 0
        %375 = vmatpush1.bf16.msra.mxu0 0
        %376 = vmatprep.subr.bf16.mxu0 0
        %377 = vmatpush1.bf16.msra.mxu0 0
        %378 = vmatprep.subr.bf16.mxu0 0
        %379 = vmatpush1.bf16.msra.mxu0 0
        %380 = vmatprep.mubr.bf16.mxu0 0
        %381 = vmatmul.mubr.bf16.gmra.mrb[0].mxu0 %v283
        %v382 = vpop.f32.mrb[0].mxu0
        %v383 = vadd.f32 0.0, %v382
        %v384 = vpop.f32.mrb[0].mxu0
        %v385 = vpop.f32.mrb[0].mxu0
        %v386 = vadd.f32 0.0, %v385
        %v387 = vpop.f32.mrb[0].mxu0
        %388 = vdwg.mxu0
        %v389 = vmul.f32 %v383, 0.7978846
        %v390 = vmul.f32 %v386, 0.7978846
        %v391 = vmul.f32 %v383, 0.044715
        %v392 = vmul.f32 %v386, 0.044715
        %v393 = vmul.f32 %v391, %v383
        %v394 = vmul.f32 %v392, %v386
        %v395 = vadd.f32 %v393, 1.0
        %v396 = vadd.f32 %v394, 1.0
        %v397 = vmul.f32 %v389, %v395
        %v398 = vmul.f32 %v390, %v396
        %v399 = vtanh.pop %v397
        %v400 = vtanh.pop %v398
        %v401 = vmul.f32 %v399, 0.5
        %v402 = vmul.f32 %v400, 0.5
        %v403 = vadd.f32 %v401, 0.5
        %v404 = vadd.f32 %v402, 0.5
        %v405 = vmul.f32 %v383, %v403
        %v406 = vmul.f32 %v386, %v404
        %v407 = vpack.c.bf16 %v406, %v405
        %v408 = vld [vmem:[%s244] sm:$0xf]
        %v409 = vld [vmem:[%s244 + $0x4] sm:$0xf]
        %v410 = vld [vmem:[%s244 + $0x8] sm:$0xf]
        %v411 = vld [vmem:[%s244 + $0xc] sm:$0xf]
        %v412 = vld [vmem:[%s244 + $0x10] sm:$0xf]
        %v413 = vld [vmem:[%s244 + $0x14] sm:$0xf]
        %v414 = vld [vmem:[%s244 + $0x18] sm:$0xf]
        %v415 = vld [vmem:[%s244 + $0x1c] sm:$0xf]
        %v416 = vld [vmem:[%s244 + $0x20] sm:$0xf]
        %v417 = vld [vmem:[%s244 + $0x24] sm:$0xf]
        %v418 = vld [vmem:[%s244 + $0x28] sm:$0xf]
        %v419 = vld [vmem:[%s244 + $0x2c] sm:$0xf]
        %v420 = vld [vmem:[%s244 + $0x30] sm:$0xf]
        %v421 = vld [vmem:[%s244 + $0x34] sm:$0xf]
        %v422 = vld [vmem:[%s244 + $0x38] sm:$0xf]
        %v423 = vld [vmem:[%s244 + $0x3c] sm:$0xf]
        %v440 = vunpack.c.l.b16 %v408
        %v441 = vunpack.c.l.b16 %v409
        %v442 = vunpack.c.l.b16 %v410
        %v443 = vunpack.c.l.b16 %v411
        %v444 = vunpack.c.l.b16 %v412
        %v445 = vunpack.c.l.b16 %v413
        %v446 = vunpack.c.l.b16 %v414
        %v447 = vunpack.c.l.b16 %v415
        %v448 = vunpack.c.l.b16 %v416
        %v449 = vunpack.c.l.b16 %v417
        %v450 = vunpack.c.l.b16 %v418
        %v451 = vunpack.c.l.b16 %v419
        %v452 = vunpack.c.l.b16 %v420
        %v453 = vunpack.c.l.b16 %v421
        %v454 = vunpack.c.l.b16 %v422
        %v455 = vunpack.c.l.b16 %v423
        %v456 = vpack.c.b16 %v441, %v440
        %v457 = vpack.c.b16 %v443, %v442
        %v458 = vpack.c.b16 %v445, %v444
        %v459 = vpack.c.b16 %v447, %v446
        %v460 = vpack.c.b16 %v449, %v448
        %v461 = vpack.c.b16 %v451, %v450
        %v462 = vpack.c.b16 %v453, %v452
        %v463 = vpack.c.b16 %v455, %v454
        %472 = vmatprep.subr.bf16.mxu0 0
        %473 = vmatpush1.bf16.msra.mxu0 %v456
        %474 = vmatprep.subr.bf16.mxu0 0
        %475 = vmatpush1.bf16.msra.mxu0 %v457
        %476 = vmatprep.subr.bf16.mxu0 0
        %477 = vmatpush1.bf16.msra.mxu0 %v458
        %478 = vmatprep.subr.bf16.mxu0 0
        %479 = vmatpush1.bf16.msra.mxu0 %v459
        %480 = vmatprep.subr.bf16.mxu0 0
        %481 = vmatpush1.bf16.msra.mxu0 %v460
        %482 = vmatprep.subr.bf16.mxu0 0
        %483 = vmatpush1.bf16.msra.mxu0 %v461
        %484 = vmatprep.subr.bf16.mxu0 0
        %485 = vmatpush1.bf16.msra.mxu0 %v462
        %486 = vmatprep.subr.bf16.mxu0 0
        %487 = vmatpush1.bf16.msra.mxu0 %v463
        %488 = vmatprep.subr.bf16.mxu0 0
        %489 = vmatpush1.bf16.msra.mxu0 0
        %490 = vmatprep.subr.bf16.mxu0 0
        %491 = vmatpush1.bf16.msra.mxu0 0
        %492 = vmatprep.subr.bf16.mxu0 0
        %493 = vmatpush1.bf16.msra.mxu0 0
        %494 = vmatprep.subr.bf16.mxu0 0
        %495 = vmatpush1.bf16.msra.mxu0 0
        %496 = vmatprep.subr.bf16.mxu0 0
        %497 = vmatpush1.bf16.msra.mxu0 0
        %498 = vmatprep.subr.bf16.mxu0 0
        %499 = vmatpush1.bf16.msra.mxu0 0
        %500 = vmatprep.subr.bf16.mxu0 0
        %501 = vmatpush1.bf16.msra.mxu0 0
        %502 = vmatprep.subr.bf16.mxu0 0
        %503 = vmatpush1.bf16.msra.mxu0 0
        %504 = vmatprep.mubr.bf16.mxu0 0
        %505 = vmatmul.mubr.bf16.gmra.mrb[0].mxu0 %v407
        %v506 = vpop.f32.mrb[0].mxu0
        %v507 = vadd.f32 0.0, %v506
        %v508 = vpop.f32.mrb[0].mxu0
        %v509 = vpop.f32.mrb[0].mxu0
        %v510 = vadd.f32 0.0, %v509
        %v511 = vpop.f32.mrb[0].mxu0
        %512 = vdwg.mxu0
        %p513 = scmp.eq.s32.totalorder %s28, 0
        // Predicated region
        $region45: #{tpu_custom_call.1} parent=31 // pred_check
          %p514 = pneg %p513
        $region46: #{tpu_custom_call.1} parent=31 // pred_check_branch
          %516 = sbr.rel (%p514) target = $region48
        $region47: #{tpu_custom_call.1} parent=31 // pred_region
          %517 = vst [vmem:[%s276] sm:$0xff] %v507
          %518 = vst [vmem:[%s276 + $0x8] sm:$0xff] %v510
        $region48: #{tpu_custom_call.1} parent=31 // pred_fallthru
          _
        %p519 = scmp.gt.s32.totalorder %s28, 0
        // Predicated region
        $region49: #{tpu_custom_call.1} parent=31 // pred_check
          %p520 = pneg %p519
        $region50: #{tpu_custom_call.1} parent=31 // pred_check_branch
          %522 = sbr.rel (%p520) target = $region52
        $region51: #{tpu_custom_call.1} parent=31 // pred_region
          %v523 = vld [vmem:[%s276] sm:$0xff]
          %v524 = vld [vmem:[%s276 + $0x8] sm:$0xff]
          %v525 = vadd.f32 %v523, %v507
          %v526 = vadd.f32 %v524, %v510
          %527 = vst [vmem:[%s276] sm:$0xff] %v525
          %528 = vst [vmem:[%s276 + $0x8] sm:$0xff] %v526
        $region52: #{tpu_custom_call.1} parent=31 // pred_fallthru
          _
        %s529 = sand.u32 %s121, 1
        %s530 = scalar_lea.sflag [#allocation4], %s529
        %s531 = sand.u32 %s121, 1
        %s532 = smul.addr %s531, 16
        %s533 = scalar_lea.vmem [#allocation8], %s532
        // Predicated region
        $region53: #{tpu_custom_call.1} parent=31 // pred_check
          %p534 = pneg %p131
        $region54: #{tpu_custom_call.1} parent=31 // pred_check_branch
          %536 = sbr.rel (%p534) target = $region56
        $region55: #{tpu_custom_call.1} parent=31 // pred_region
          %s537 = smul.u32 2, %s27
          %s539 = ssub.s32 256, 256
          %540 = vsyncadd %s530, %s539
          %s541 = smul.addr %s537, 128
          %s542 = scalar_lea.hbm %s3, %s541
          %s543 = sshll.u32 %s533, 4
          %s544 = int_to_ptr.vmem [resolvable:$true] %s543
          %549 = dma.vmem_to_hbm [thread:$0]  %s544, 256, %s542, %s530, 128, 128, 8
        $region56: #{tpu_custom_call.1} parent=31 // pred_fallthru
          _
      $region32: #{tpu_custom_call.1} parent=5 // pred_fallthru
        _
      %p550 = scmp.le.s32.totalorder 2, %s18
      // Predicated region
      $region57: #{tpu_custom_call.1} parent=5 // pred_check
        %p551 = pneg %p550
      $region58: #{tpu_custom_call.1} parent=5 // pred_check_branch
        %553 = sbr.rel (%p551) target = $region60
      $region59: #{tpu_custom_call.1} parent=5 // pred_region
        %s554 = ssub.s32 %s18, 2
        // Predicated region
        $region61: #{tpu_custom_call.1} parent=59 // pred_check
          %p555 = pneg %p137
        $region62: #{tpu_custom_call.1} parent=59 // pred_check_branch
          %557 = sbr.rel (%p555) target = $region64
        $region63: #{tpu_custom_call.1} parent=59 // pred_region
          %s558 = sand.u32 %s122, 1
          %s559 = scalar_lea.sflag [#allocation4], %s558
          %s560 = sand.u32 %s122, 1
          %s561 = smul.addr %s560, 16
          %s562 = scalar_lea.vmem [#allocation8], %s561
          %563 = dma.done %s559, 256
        $region64: #{tpu_custom_call.1} parent=59 // pred_fallthru
          _
      $region60: #{tpu_custom_call.1} parent=5 // pred_fallthru
        _
    $region6: #{tpu_custom_call.1} parent=1 // loop_footer
      %s22 = sadd.s32 1, %s18
    $region7: #{tpu_custom_call.1} parent=1 // loop_footer_branch
      %17 = sbr.rel target = $region3
    $region8: #{tpu_custom_call.1} parent=1 // loop_exit
      _
    %564 = vsyncpa [#allocation3], 1
    %s565 = scalar_lea.sflag [#allocation3], 1
    %566 = vsyncpa %s565, 1
    %567 = vsyncpa [#allocation6], 1
    %s568 = scalar_lea.sflag [#allocation6], 1
    %569 = vsyncpa %s568, 1
    %570 = vsyncpa [#allocation4], 1
    %s571 = scalar_lea.sflag [#allocation4], 1
    %572 = vsyncpa %s571, 1

</llo_original>
